<compile_context>
chip_gen: v6e
topology: v6e:2x2x1
jax: 0.10.0
libtpu: 0.0.40
codegen_flags: <defaults>
</compile_context>

<pallas_src>
import jax
import jax.numpy as jnp
from jax import lax
from jax.experimental import pallas as pl
from jax.experimental.pallas import tpu as pltpu


def _round_up(x, m):
    return ((x + m - 1) // m) * m


def _choose_tiles(B, D_in, D_out):
    """Pick (padded_dim, tile) per axis: target tile first, pad dim to it."""
    # M (batch): cover the whole batch when small -> weight streamed once.
    MAX_TM = 512
    m_min = _round_up(B, 8)
    if m_min <= MAX_TM:
        tm, M_pad = m_min, m_min
    else:
        tm, M_pad = MAX_TM, _round_up(B, MAX_TM)

    # K (contraction): cover it in one tile when it fits, else 512-deep tiles.
    MAX_TK = 1024
    k_min = _round_up(D_in, 128)
    if k_min <= MAX_TK:
        tk, K_pad = k_min, k_min
    else:
        tk, K_pad = 512, _round_up(D_in, 512)

    # N (output features): 256-wide tiles (fills the 256-lane MXU on v6e/v7x,
    # still a multiple of 128 for v5e); small outputs collapse to one tile.
    n_min = _round_up(D_out, 128)
    if n_min <= 256:
        tn, N_pad = n_min, n_min
    else:
        tn, N_pad = 256, _round_up(D_out, 256)

    return (M_pad, tm), (K_pad, tk), (N_pad, tn)


def _linear_kernel_single_k(x_ref, w_ref, b_ref, o_ref):
    # Whole contraction in one step: no accumulator round-trip needed.
    o_ref[...] = (
        jnp.dot(x_ref[...], w_ref[...], preferred_element_type=jnp.float32)
        + b_ref[...]
    ).astype(o_ref.dtype)


def _linear_kernel_multi_k(x_ref, w_ref, b_ref, o_ref, acc_ref):
    # x_ref: (tm, tk), w_ref: (tk, tn) [weight pre-transposed on host],
    # b_ref: (1, tn), o_ref: (tm, tn), acc_ref: (tm, tn) f32 accumulator.
    k = pl.program_id(2)
    partial = jnp.dot(x_ref[...], w_ref[...], preferred_element_type=jnp.float32)

    @pl.when(k == 0)
    def _():
        acc_ref[...] = partial          # first partial: write, don't zero+add

    @pl.when(k != 0)
    def _():
        acc_ref[...] += partial

    @pl.when(k == pl.num_programs(2) - 1)
    def _():
        o_ref[...] = (acc_ref[...] + b_ref[...]).astype(o_ref.dtype)


def linear_forward(x, weight, bias):
    """y = x @ weight.T + bias, matching torch.nn.Linear semantics.

    x:      (B, D_in)
    weight: (D_out, D_in)   (PyTorch layout)
    bias:   (D_out,)
    """
    B, D_in = x.shape
    D_out, D_in_w = weight.shape
    assert D_in == D_in_w, "weight must be (D_out, D_in)"

    (M_pad, tm), (K_pad, tk), (N_pad, tn) = _choose_tiles(B, D_in, D_out)

    # Pad activation; transpose the weight ONCE to (K, N) and pad it.
    x_p = x
    if (M_pad, K_pad) != (B, D_in):
        x_p = jnp.pad(x, ((0, M_pad - B), (0, K_pad - D_in)))
    w_t = weight.T                                   # (D_in, D_out), one-time
    if (K_pad, N_pad) != (D_in, D_out):
        w_t = jnp.pad(w_t, ((0, K_pad - D_in), (0, N_pad - D_out)))
    b_p = bias if N_pad == D_out else jnp.pad(bias, (0, N_pad - D_out))
    b_p = b_p.reshape(1, N_pad)

    grid_m, grid_n, grid_k = M_pad // tm, N_pad // tn, K_pad // tk
    grid = (grid_m, grid_n, grid_k)

    cost = pl.CostEstimate(
        flops=2 * M_pad * K_pad * N_pad,
        transcendentals=0,
        bytes_accessed=4 * (
            M_pad * K_pad * grid_n      # x re-streamed once per N tile
            + K_pad * N_pad * grid_m    # W re-streamed once per M tile
            + M_pad * N_pad             # output written once
            + N_pad * grid_m            # bias
        ),
    )

    if grid_k == 1:
        kernel = _linear_kernel_single_k
        scratch_shapes = []
    else:
        kernel = _linear_kernel_multi_k
        scratch_shapes = [pltpu.VMEM((tm, tn), jnp.float32)]

    y_p = pl.pallas_call(
        kernel,
        out_shape=jax.ShapeDtypeStruct((M_pad, N_pad), x.dtype),
        grid_spec=pltpu.PrefetchScalarGridSpec(
            num_scalar_prefetch=0,
            grid=grid,
            in_specs=[
                pl.BlockSpec((tm, tk), lambda i, j, k: (i, k)),   # x tile
                pl.BlockSpec((tk, tn), lambda i, j, k: (k, j)),   # W^T tile
                pl.BlockSpec((1, tn), lambda i, j, k: (0, j)),    # bias tile
            ],
            out_specs=pl.BlockSpec((tm, tn), lambda i, j, k: (i, j)),
            scratch_shapes=scratch_shapes,
        ),
        compiler_params=pltpu.CompilerParams(
            dimension_semantics=("parallel", "parallel", "arbitrary"),
            vmem_limit_bytes=48 * 1024 * 1024,
        ),
        cost_estimate=cost,
    )(x_p, w_t, b_p)

    # Drop the zero-padded rows/columns.
    return y_p[:B, :D_out]


if __name__ == "__main__":
    # Shapes implied by nn.Linear(input_size, output_size)
    batch, input_size, output_size = 8, 32, 16

    key = jax.random.PRNGKey(0)
    kx, kw, kb = jax.random.split(key, 3)

    x = jax.random.normal(kx, (batch, input_size), dtype=jnp.float32)
    bound = 1.0 / (input_size ** 0.5)
    weight = jax.random.uniform(kw, (output_size, input_size),
                                minval=-bound, maxval=bound, dtype=jnp.float32)
    bias = jax.random.uniform(kb, (output_size,),
                              minval=-bound, maxval=bound, dtype=jnp.float32)

    fwd = jax.jit(linear_forward)

    y = fwd(x, weight, bias)
    jax.block_until_ready(y)

    y_ref = jnp.dot(x, weight.T, precision=lax.Precision.HIGHEST) + bias
    assert y.shape == y_ref.shape
    assert jnp.allclose(y, y_ref, atol=1e-4, rtol=1e-4), "mismatch vs reference"

    # Second check: non-power-of-two shapes exercising the padding/slicing path
    # and the multi-N-tile grid (tn=256, N_pad=512 -> 2 parallel N tiles).
    B2, Din2, Dout2 = 136, 384, 272
    k2x, k2w, k2b = jax.random.split(jax.random.PRNGKey(1), 3)
    x2 = jax.random.normal(k2x, (B2, Din2), dtype=jnp.float32)
    w2 = jax.random.normal(k2w, (Dout2, Din2), dtype=jnp.float32) * 0.05
    b2 = jax.random.normal(k2b, (Dout2,), dtype=jnp.float32)

    y2 = fwd(x2, w2, b2)
    jax.block_until_ready(y2)
    y2_ref = jnp.dot(x2, w2.T, precision=lax.Precision.HIGHEST) + b2
    assert jnp.allclose(y2, y2_ref, atol=1e-3, rtol=1e-4), "mismatch vs reference (tiled)"

    # Third check: large batch / deep K -> exercises the multi-K accumulator
    # kernel (tm=512, tk=512, K grid > 1).
    B3, Din3, Dout3 = 1030, 1536, 200
    k3x, k3w, k3b = jax.random.split(jax.random.PRNGKey(2), 3)
    x3 = jax.random.normal(k3x, (B3, Din3), dtype=jnp.float32)
    w3 = jax.random.normal(k3w, (Dout3, Din3), dtype=jnp.float32) * 0.02
    b3 = jax.random.normal(k3b, (Dout3,), dtype=jnp.float32)

    y3 = fwd(x3, w3, b3)
    jax.block_until_ready(y3)
    y3_ref = jnp.dot(x3, w3.T, precision=lax.Precision.HIGHEST) + b3
    assert jnp.allclose(y3, y3_ref, atol=1e-2, rtol=1e-4), "mismatch vs reference (multi-K)"

    print("KERNEL_OK")
</pallas_src>

<mosaic_0001>
module attributes {stable_mosaic.version = 11 : i64} {
  func.func @_linear_kernel_single_k(%arg0: i32, %arg1: i32, %arg2: i32, %arg3: memref<8x128xf32, #tpu.memory_space<vmem>>, %arg4: memref<128x128xf32, #tpu.memory_space<vmem>>, %arg5: memref<1x128xf32, #tpu.memory_space<vmem>>, %arg6: memref<8x128xf32, #tpu.memory_space<vmem>>) attributes {dimension_semantics = [#tpu.dimension_semantics<parallel>, #tpu.dimension_semantics<parallel>, #tpu.dimension_semantics<arbitrary>], iteration_bounds = array<i64: 1, 1, 1>, scalar_prefetch = 0 : i64, scratch_operands = 0 : i64, tpu.core_type = #tpu.core_type<tc>, window_params = [{transform_indices = @transform_0, window_bounds = array<i64: 8, 128>}, {transform_indices = @transform_1, window_bounds = array<i64: 128, 128>}, {transform_indices = @transform_2, window_bounds = array<i64: 1, 128>}, {transform_indices = @transform_3, window_bounds = array<i64: 8, 128>}]} {
    %c0 = arith.constant 0 : index
    %c0_0 = arith.constant 0 : index
    %0 = vector.load %arg3[%c0, %c0_0] : memref<8x128xf32, #tpu.memory_space<vmem>>, vector<8x128xf32>
    %c0_1 = arith.constant 0 : index
    %c0_2 = arith.constant 0 : index
    %1 = vector.load %arg4[%c0_1, %c0_2] : memref<128x128xf32, #tpu.memory_space<vmem>>, vector<128x128xf32>
    %cst = arith.constant dense<0.000000e+00> : vector<8x128xf32>
    %2 = tpu.matmul %0, %1, %cst {dimension_numbers = #tpu.dot_dimension_numbers<[1], [0], [0], [1], [0, 0, 1, 1], [], []>} : vector<8x128xf32>, vector<128x128xf32>, vector<8x128xf32> -> vector<8x128xf32>
    %c0_3 = arith.constant 0 : index
    %c0_4 = arith.constant 0 : index
    %3 = vector.load %arg5[%c0_3, %c0_4] : memref<1x128xf32, #tpu.memory_space<vmem>>, vector<1x128xf32>
    %4 = vector.broadcast %3 : vector<1x128xf32> to vector<8x128xf32>
    %5 = arith.addf %2, %4 : vector<8x128xf32>
    %c0_5 = arith.constant 0 : index
    %c0_6 = arith.constant 0 : index
    %6 = vector.load %arg6[%c0_5, %c0_6] : memref<8x128xf32, #tpu.memory_space<vmem>>, vector<8x128xf32>
    tpu.vector_store %arg6[%c0_5, %c0_6], %5 {strides = array<i32>} : memref<8x128xf32, #tpu.memory_space<vmem>>, vector<8x128xf32>,
    return
  }
  func.func @transform_0(%arg0: i32, %arg1: i32, %arg2: i32) -> (i32, i32) {
    %c0_i32 = arith.constant 0 : i32
    return %arg0, %arg2 : i32, i32
  }
  func.func @transform_1(%arg0: i32, %arg1: i32, %arg2: i32) -> (i32, i32) {
    %c0_i32 = arith.constant 0 : i32
    return %arg2, %arg1 : i32, i32
  }
  func.func @transform_2(%arg0: i32, %arg1: i32, %arg2: i32) -> (i32, i32) {
    %c0_i32 = arith.constant 0 : i32
    %c0_i32_0 = arith.constant 0 : i32
    return %c0_i32, %arg1 : i32, i32
  }
  func.func @transform_3(%arg0: i32, %arg1: i32, %arg2: i32) -> (i32, i32) {
    %c0_i32 = arith.constant 0 : i32
    return %arg0, %arg1 : i32, i32
  }
}

</mosaic_0001>

<llo_original>
// kernel: linear_forward.1
$region0: #{linear_forward.1}
  #allocation0 [shape = 'u32[]', space=smem, size = 0x4, offset = 0x4, fixed_abs, tag = 'smem constant byte address 0x4 - core index']
  #allocation1 [shape = 'u32[144,128]{1,0:T(1,128)}', space=vmem, size = 0x12000, scoped, tag = 'internal scratch']
  %s0 = inlined_call_operand.vmem [shape: f32[8,128], index: 0, kind: input, shape index: {}]
  %s1 = inlined_call_operand.vmem [shape: f32[128,128], index: 1, kind: input, shape index: {}]
  %s2 = inlined_call_operand.vmem [shape: f32[1,128], index: 2, kind: input, shape index: {}]
  %s3 = inlined_call_operand.hbm [shape: f32[8,128], index: 3, kind: output, shape index: {}]
  %s4 = sld [smem:[#allocation0]]
  $region22: #{linear_forward.1} parent=0
    _
  %s6 = ssub.s32 1, %s4
  %s7 = scalar_select 0, %s6, %s4
  $region1: #{linear_forward.1} parent=0
    #allocation2 [shape = 'u8[4096]{0}', space=vmem, size = 0x1000, scoped, tag = 'output window, operand 0, single buffered']
    #allocation3 [shape = 's32[1]{0}', space=sflag, size = 0x4, scoped, tag = 'scoped memory for linear_forward.1']
    %8 = vsyncpa [#allocation3], 0
    // Predicated region
    $region2: #{linear_forward.1} parent=1 // pred_check
      _
    $region3: #{linear_forward.1} parent=1 // pred_check_branch
      %10 = sbr.rel (0) target = $region5
    $region4: #{linear_forward.1} parent=1 // pred_region
      _
    $region5: #{linear_forward.1} parent=1 // pred_fallthru
      _
    // Predicated region
    $region6: #{linear_forward.1} parent=1 // pred_check
      _
    $region7: #{linear_forward.1} parent=1 // pred_check_branch
      %12 = sbr.rel (0) target = $region9
    $region8: #{linear_forward.1} parent=1 // pred_region
      _
    $region9: #{linear_forward.1} parent=1 // pred_fallthru
      _
    // Predicated region
    $region10: #{linear_forward.1} parent=1 // pred_check
      _
    $region11: #{linear_forward.1} parent=1 // pred_check_branch
      %14 = sbr.rel (0) target = $region13
    $region12: #{linear_forward.1} parent=1 // pred_region
      _
    $region13: #{linear_forward.1} parent=1 // pred_fallthru
      _
    %v15 = vld [vmem:[%s0] sm:$0xff]
    %v16 = vld [vmem:[%s1] sm:$0xff]
    %v17 = vld [vmem:[%s1 + $0x8] sm:$0xff]
    %v18 = vld [vmem:[%s1 + $0x10] sm:$0xff]
    %v19 = vld [vmem:[%s1 + $0x18] sm:$0xff]
    %v20 = vld [vmem:[%s1 + $0x20] sm:$0xff]
    %v21 = vld [vmem:[%s1 + $0x28] sm:$0xff]
    %v22 = vld [vmem:[%s1 + $0x30] sm:$0xff]
    %v23 = vld [vmem:[%s1 + $0x38] sm:$0xff]
    %v24 = vld [vmem:[%s1 + $0x40] sm:$0xff]
    %v25 = vld [vmem:[%s1 + $0x48] sm:$0xff]
    %v26 = vld [vmem:[%s1 + $0x50] sm:$0xff]
    %v27 = vld [vmem:[%s1 + $0x58] sm:$0xff]
    %v28 = vld [vmem:[%s1 + $0x60] sm:$0xff]
    %v29 = vld [vmem:[%s1 + $0x68] sm:$0xff]
    %v30 = vld [vmem:[%s1 + $0x70] sm:$0xff]
    %v31 = vld [vmem:[%s1 + $0x78] sm:$0xff]
    %v32 = vld [vmem:[%s2] sm:$0x1]
    %v34 = vlaneseq
    %v35 = vshrl.u32 %v34, 7
    %v36 = vsub.s32 0, %v35
    %v37 = vrot.slane %v32, %v36
    %39 = vmatprep.subr.mxu0 0.0
    %40 = vmatpush1.msra.mxu0 %v31
    %41 = vmatprep.subr.mxu0 0.0
    %42 = vmatpush1.msra.mxu0 %v30
    %43 = vmatprep.subr.mxu0 0.0
    %44 = vmatpush1.msra.mxu0 %v29
    %45 = vmatprep.subr.mxu0 0.0
    %46 = vmatpush1.msra.mxu0 %v28
    %47 = vmatprep.subr.mxu0 0.0
    %48 = vmatpush1.msra.mxu0 %v27
    %49 = vmatprep.subr.mxu0 0.0
    %50 = vmatpush1.msra.mxu0 %v26
    %51 = vmatprep.subr.mxu0 0.0
    %52 = vmatpush1.msra.mxu0 %v25
    %53 = vmatprep.subr.mxu0 0.0
    %54 = vmatpush1.msra.mxu0 %v24
    %55 = vmatprep.subr.mxu0 0.0
    %56 = vmatpush1.msra.mxu0 %v23
    %57 = vmatprep.subr.mxu0 0.0
    %58 = vmatpush1.msra.mxu0 %v22
    %59 = vmatprep.subr.mxu0 0.0
    %60 = vmatpush1.msra.mxu0 %v21
    %61 = vmatprep.subr.mxu0 0.0
    %62 = vmatpush1.msra.mxu0 %v20
    %63 = vmatprep.subr.mxu0 0.0
    %64 = vmatpush1.msra.mxu0 %v19
    %65 = vmatprep.subr.mxu0 0.0
    %66 = vmatpush1.msra.mxu0 %v18
    %67 = vmatprep.subr.mxu0 0.0
    %68 = vmatpush1.msra.mxu0 %v17
    %69 = vmatprep.subr.mxu0 0.0
    %70 = vmatpush1.msra.mxu0 %v16
    %71 = vmatprep.subr.mxu0 0.0
    %72 = vmatpush2.msra.mxu0 0.0
    %73 = vmatprep.subr.mxu0 0.0
    %74 = vmatpush2.msra.mxu0 0.0
    %75 = vmatprep.subr.mxu0 0.0
    %76 = vmatpush2.msra.mxu0 0.0
    %77 = vmatprep.subr.mxu0 0.0
    %78 = vmatpush2.msra.mxu0 0.0
    %79 = vmatprep.subr.mxu0 0.0
    %80 = vmatpush2.msra.mxu0 0.0
    %81 = vmatprep.subr.mxu0 0.0
    %82 = vmatpush2.msra.mxu0 0.0
    %83 = vmatprep.subr.mxu0 0.0
    %84 = vmatpush2.msra.mxu0 0.0
    %85 = vmatprep.subr.mxu0 0.0
    %86 = vmatpush2.msra.mxu0 0.0
    %87 = vmatprep.subr.mxu0 0.0
    %88 = vmatpush2.msra.mxu0 0.0
    %89 = vmatprep.subr.mxu0 0.0
    %90 = vmatpush2.msra.mxu0 0.0
    %91 = vmatprep.subr.mxu0 0.0
    %92 = vmatpush2.msra.mxu0 0.0
    %93 = vmatprep.subr.mxu0 0.0
    %94 = vmatpush2.msra.mxu0 0.0
    %95 = vmatprep.subr.mxu0 0.0
    %96 = vmatpush2.msra.mxu0 0.0
    %97 = vmatprep.subr.mxu0 0.0
    %98 = vmatpush2.msra.mxu0 0.0
    %99 = vmatprep.subr.mxu0 0.0
    %100 = vmatpush2.msra.mxu0 0.0
    %101 = vmatprep.subr.mxu0 0.0
    %102 = vmatpush2.msra.mxu0 0.0
    %103 = vmatprep.mubr.f32.mxu0 0.0
    %104 = vmatmul.mubr.f32.gmra.mxu0 %v15
    %v105 = vpop.f32.mrf.mxu0
    %v106 = vadd.f32 %v37, %v105
    %v107 = vpop.f32.mrf.mxu0
    %108 = vdwg.mxu0
    %109 = vst [vmem:[#allocation2] sm:$0xff] %v106
    // Predicated region
    $region14: #{linear_forward.1} parent=1 // pred_check
      _
    $region15: #{linear_forward.1} parent=1 // pred_check_branch
      %111 = sbr.rel (0) target = $region17
    $region16: #{linear_forward.1} parent=1 // pred_region
      %s113 = ssub.s32 128, 128
      %114 = vsyncadd [#allocation3], %s113
      %s116 = sshll.u32 [#allocation2], 4
      %s117 = int_to_ptr.vmem [resolvable:$true] %s116
      %119 = dma.vmem_to_hbm [thread:$0]  %s117, 128, %s3, [#allocation3]
    $region17: #{linear_forward.1} parent=1 // pred_fallthru
      _
    // Predicated region
    $region18: #{linear_forward.1} parent=1 // pred_check
      _
    $region19: #{linear_forward.1} parent=1 // pred_check_branch
      %121 = sbr.rel (0) target = $region21
    $region20: #{linear_forward.1} parent=1 // pred_region
      %122 = dma.done [#allocation3], 128
    $region21: #{linear_forward.1} parent=1 // pred_fallthru
      _
    %123 = vsyncpa [#allocation3], 1

</llo_original>
